<compile_context>
chip_gen: v6e
topology: v6e:2x2x1
jax: 0.10.0
libtpu: 0.0.40
codegen_flags: <defaults>
</compile_context>

<pallas_src>
import jax
import jax.numpy as jnp
from jax import lax
from jax.experimental import pallas as pl
from jax.experimental.pallas import tpu as pltpu

# ---- static shape configuration (matches the module) ----
H, W = 32, 32
KH, KW = 11, 1
SH, SW = 3, 2
PH, PW = 1, 3
H_OUT = (H + 2 * PH - KH) // SH + 1     # 8
W_OUT = (W + 2 * PW - KW) // SW + 1     # 19

L_IN = H_OUT * W_OUT                    # 152
KT, ST, PT = 3, 3, 2
L_OUT = (L_IN - 1) * ST - 2 * PT + KT   # 452

LANE = 128                              # lane-dense output width (>= ST * W_OUT = 57)


# ---------------- fused Pallas kernel ----------------

def _fused_kernel(x_ref, w1_ref, wt_ref, b1_ref, b2_ref, o_ref):
    x = x_ref[...]                                                  # (32, 32) f32

    # --- Conv2d, kernel width 1 => separable:  v1 = W_row @ x @ C + b1 ---
    # Row-combination matrix (8, 32): W_row[oh, r] = w[r + PH - 3*oh] (zero-padding folded in).
    oh_i = lax.broadcasted_iota(jnp.int32, (H_OUT, H), 0)
    r_i = lax.broadcasted_iota(jnp.int32, (H_OUT, H), 1)
    kh_idx = r_i + PH - SH * oh_i
    w_row = jnp.zeros((H_OUT, H), jnp.float32)
    for kh in range(KH):                                            # 11 cheap VPU selects
        w_row = w_row + jnp.where(kh_idx == kh, w1_ref[kh], 0.0)

    # Column-selection matrix (32, 19): picks x[:, 2*ow - PW] (out-of-range cols -> 0 pad).
    rc = lax.broadcasted_iota(jnp.int32, (W, W_OUT), 0)
    oc = lax.broadcasted_iota(jnp.int32, (W, W_OUT), 1)
    c_sel = jnp.where(rc + PW == SW * oc, 1.0, 0.0).astype(jnp.float32)

    t = jnp.dot(w_row, x, preferred_element_type=jnp.float32)       # (8, 32)
    v1 = jnp.dot(t, c_sel, preferred_element_type=jnp.float32) + b1_ref[0]   # (8, 19)

    # --- ConvTranspose1d (stride == kernel == 3 => non-overlapping windows) ---
    # Spread matrix (19, 128): M[ow, 3*ow + k] = wt[k]; columns >= 57 stay 0.
    om = lax.broadcasted_iota(jnp.int32, (W_OUT, LANE), 0)
    jm = lax.broadcasted_iota(jnp.int32, (W_OUT, LANE), 1)
    kt_idx = jm - ST * om
    m_spread = jnp.zeros((W_OUT, LANE), jnp.float32)
    for kt in range(KT):                                            # 3 cheap VPU selects
        m_spread = m_spread + jnp.where(kt_idx == kt, wt_ref[kt], 0.0)

    z = jnp.dot(v1, m_spread, preferred_element_type=jnp.float32) + b2_ref[0]  # (8, 128)
    o_ref[...] = jax.nn.sigmoid(z)                                  # lane-dense unmasked store


# ---------------- wrapper ----------------

def model_forward(x, conv_w, conv_b, convt_w, convt_b):
    """x: (1,1,32,32) f32; conv_w: (1,1,11,1); conv_b: (1,); convt_w: (1,1,3); convt_b: (1,)"""
    x2d = x[0, 0].astype(jnp.float32)                 # (32, 32), raw (padding folded in-kernel)
    w1 = conv_w.reshape(KH).astype(jnp.float32)       # (11,)
    wt = convt_w.reshape(KT).astype(jnp.float32)      # (3,)
    b1 = conv_b.reshape(1).astype(jnp.float32)        # (1,)
    b2 = convt_b.reshape(1).astype(jnp.float32)       # (1,)

    z = pl.pallas_call(
        _fused_kernel,
        out_shape=jax.ShapeDtypeStruct((H_OUT, LANE), jnp.float32),
        in_specs=[
            pl.BlockSpec(memory_space=pltpu.MemorySpace.VMEM),   # x  (32, 32)
            pl.BlockSpec(memory_space=pltpu.MemorySpace.SMEM),   # w1 (11,)
            pl.BlockSpec(memory_space=pltpu.MemorySpace.SMEM),   # wt (3,)
            pl.BlockSpec(memory_space=pltpu.MemorySpace.SMEM),   # b1 (1,)
            pl.BlockSpec(memory_space=pltpu.MemorySpace.SMEM),   # b2 (1,)
        ],
        out_specs=pl.BlockSpec(memory_space=pltpu.MemorySpace.VMEM),
    )(x2d, w1, wt, b1, b2)

    # TODO(synk): PyTorch errors here (ConvTranspose1d on 4-D input); we flatten to (1, 152).
    # Non-overlapping windows: row oh of z holds output positions 57*oh .. 57*oh+56 of the
    # un-cropped transposed-conv sequence; crop padding=2 from each end.
    y = z[:, : ST * W_OUT].reshape(ST * L_IN)[PT: PT + L_OUT]
    return y.reshape(1, 1, L_OUT)


# ---------------- pure-JAX reference for validation ----------------

def reference_forward(x, conv_w, conv_b, convt_w, convt_b):
    v1 = lax.conv_general_dilated(
        x, conv_w, window_strides=(SH, SW), padding=((PH, PH), (PW, PW)),
        dimension_numbers=('NCHW', 'OIHW', 'NCHW')) + conv_b[0]
    v1f = v1.reshape(1, 1, L_IN)
    # conv_transpose == correlation of the lhs-dilated input with the flipped kernel
    v2 = lax.conv_general_dilated(
        v1f, jnp.flip(convt_w, axis=-1), window_strides=(1,),
        padding=((KT - 1 - PT, KT - 1 - PT),), lhs_dilation=(ST,),
        dimension_numbers=('NCH', 'OIH', 'NCH')) + convt_b[0]
    return jax.nn.sigmoid(v2)


if __name__ == "__main__":
    key = jax.random.PRNGKey(0)
    kx, k1, k2, k3, k4 = jax.random.split(key, 5)

    # deterministic inputs / parameters (shapes per the module's __init__)
    x1 = jax.random.normal(kx, (1, 1, 32, 32), dtype=jnp.float32)
    conv_w = jax.random.normal(k1, (1, 1, 11, 1), dtype=jnp.float32) * 0.3
    conv_b = jax.random.normal(k2, (1,), dtype=jnp.float32) * 0.1
    convt_w = jax.random.normal(k3, (1, 1, 3), dtype=jnp.float32) * 0.3
    convt_b = jax.random.normal(k4, (1,), dtype=jnp.float32) * 0.1

    out = model_forward(x1, conv_w, conv_b, convt_w, convt_b)
    out = jax.block_until_ready(out)

    ref = reference_forward(x1, conv_w, conv_b, convt_w, convt_b)
    assert out.shape == (1, 1, L_OUT), out.shape
    assert jnp.allclose(out, ref, atol=1e-5, rtol=1e-5), float(jnp.max(jnp.abs(out - ref)))

    print("KERNEL_OK")
</pallas_src>

<mosaic_0001>
module attributes {stable_mosaic.version = 11 : i64} {
  func.func @_fused_kernel(%arg0: memref<32x32xf32, #tpu.memory_space<vmem>>, %arg1: memref<11xf32, #tpu.memory_space<smem>>, %arg2: memref<3xf32, #tpu.memory_space<smem>>, %arg3: memref<1xf32, #tpu.memory_space<smem>>, %arg4: memref<1xf32, #tpu.memory_space<smem>>, %arg5: memref<8x128xf32, #tpu.memory_space<vmem>>) attributes {dimension_semantics = [], scalar_prefetch = 0 : i64, scratch_operands = 0 : i64, tpu.core_type = #tpu.core_type<tc>} {
    %c0 = arith.constant 0 : index
    %c0_0 = arith.constant 0 : index
    %0 = vector.load %arg0[%c0, %c0_0] : memref<32x32xf32, #tpu.memory_space<vmem>>, vector<32x32xf32>
    %1 = tpu.iota {dimensions = array<i32: 0>} : vector<8x32xi32>
    %2 = tpu.iota {dimensions = array<i32: 1>} : vector<8x32xi32>
    %c1_i32 = arith.constant 1 : i32
    %3 = vector.broadcast %c1_i32 : i32 to vector<8x32xi32>
    %4 = arith.addi %2, %3 : vector<8x32xi32>
    %c3_i32 = arith.constant 3 : i32
    %5 = vector.broadcast %c3_i32 : i32 to vector<8x32xi32>
    %6 = arith.muli %5, %1 : vector<8x32xi32>
    %7 = arith.subi %4, %6 : vector<8x32xi32>
    %cst = arith.constant 0.000000e+00 : f32
    %8 = vector.broadcast %cst : f32 to vector<8x32xf32>
    %c0_i32 = arith.constant 0 : i32
    %9 = vector.broadcast %c0_i32 : i32 to vector<8x32xi32>
    %10 = arith.cmpi eq, %7, %9 : vector<8x32xi32>
    %c0_1 = arith.constant 0 : index
    %11 = memref.load %arg1[%c0_1] : memref<11xf32, #tpu.memory_space<smem>>
    %cst_2 = arith.constant 0.000000e+00 : f32
    %12 = vector.broadcast %11 : f32 to vector<8x32xf32>
    %13 = vector.broadcast %cst_2 : f32 to vector<8x32xf32>
    %14 = arith.select %10, %12, %13 : vector<8x32xi1>, vector<8x32xf32>
    %15 = arith.addf %8, %14 : vector<8x32xf32>
    %c1_i32_3 = arith.constant 1 : i32
    %16 = vector.broadcast %c1_i32_3 : i32 to vector<8x32xi32>
    %17 = arith.cmpi eq, %7, %16 : vector<8x32xi32>
    %c1 = arith.constant 1 : index
    %18 = memref.load %arg1[%c1] : memref<11xf32, #tpu.memory_space<smem>>
    %cst_4 = arith.constant 0.000000e+00 : f32
    %19 = vector.broadcast %18 : f32 to vector<8x32xf32>
    %20 = vector.broadcast %cst_4 : f32 to vector<8x32xf32>
    %21 = arith.select %17, %19, %20 : vector<8x32xi1>, vector<8x32xf32>
    %22 = arith.addf %15, %21 : vector<8x32xf32>
    %c2_i32 = arith.constant 2 : i32
    %23 = vector.broadcast %c2_i32 : i32 to vector<8x32xi32>
    %24 = arith.cmpi eq, %7, %23 : vector<8x32xi32>
    %c2 = arith.constant 2 : index
    %25 = memref.load %arg1[%c2] : memref<11xf32, #tpu.memory_space<smem>>
    %cst_5 = arith.constant 0.000000e+00 : f32
    %26 = vector.broadcast %25 : f32 to vector<8x32xf32>
    %27 = vector.broadcast %cst_5 : f32 to vector<8x32xf32>
    %28 = arith.select %24, %26, %27 : vector<8x32xi1>, vector<8x32xf32>
    %29 = arith.addf %22, %28 : vector<8x32xf32>
    %c3_i32_6 = arith.constant 3 : i32
    %30 = vector.broadcast %c3_i32_6 : i32 to vector<8x32xi32>
    %31 = arith.cmpi eq, %7, %30 : vector<8x32xi32>
    %c3 = arith.constant 3 : index
    %32 = memref.load %arg1[%c3] : memref<11xf32, #tpu.memory_space<smem>>
    %cst_7 = arith.constant 0.000000e+00 : f32
    %33 = vector.broadcast %32 : f32 to vector<8x32xf32>
    %34 = vector.broadcast %cst_7 : f32 to vector<8x32xf32>
    %35 = arith.select %31, %33, %34 : vector<8x32xi1>, vector<8x32xf32>
    %36 = arith.addf %29, %35 : vector<8x32xf32>
    %c4_i32 = arith.constant 4 : i32
    %37 = vector.broadcast %c4_i32 : i32 to vector<8x32xi32>
    %38 = arith.cmpi eq, %7, %37 : vector<8x32xi32>
    %c4 = arith.constant 4 : index
    %39 = memref.load %arg1[%c4] : memref<11xf32, #tpu.memory_space<smem>>
    %cst_8 = arith.constant 0.000000e+00 : f32
    %40 = vector.broadcast %39 : f32 to vector<8x32xf32>
    %41 = vector.broadcast %cst_8 : f32 to vector<8x32xf32>
    %42 = arith.select %38, %40, %41 : vector<8x32xi1>, vector<8x32xf32>
    %43 = arith.addf %36, %42 : vector<8x32xf32>
    %c5_i32 = arith.constant 5 : i32
    %44 = vector.broadcast %c5_i32 : i32 to vector<8x32xi32>
    %45 = arith.cmpi eq, %7, %44 : vector<8x32xi32>
    %c5 = arith.constant 5 : index
    %46 = memref.load %arg1[%c5] : memref<11xf32, #tpu.memory_space<smem>>
    %cst_9 = arith.constant 0.000000e+00 : f32
    %47 = vector.broadcast %46 : f32 to vector<8x32xf32>
    %48 = vector.broadcast %cst_9 : f32 to vector<8x32xf32>
    %49 = arith.select %45, %47, %48 : vector<8x32xi1>, vector<8x32xf32>
    %50 = arith.addf %43, %49 : vector<8x32xf32>
    %c6_i32 = arith.constant 6 : i32
    %51 = vector.broadcast %c6_i32 : i32 to vector<8x32xi32>
    %52 = arith.cmpi eq, %7, %51 : vector<8x32xi32>
    %c6 = arith.constant 6 : index
    %53 = memref.load %arg1[%c6] : memref<11xf32, #tpu.memory_space<smem>>
    %cst_10 = arith.constant 0.000000e+00 : f32
    %54 = vector.broadcast %53 : f32 to vector<8x32xf32>
    %55 = vector.broadcast %cst_10 : f32 to vector<8x32xf32>
    %56 = arith.select %52, %54, %55 : vector<8x32xi1>, vector<8x32xf32>
    %57 = arith.addf %50, %56 : vector<8x32xf32>
    %c7_i32 = arith.constant 7 : i32
    %58 = vector.broadcast %c7_i32 : i32 to vector<8x32xi32>
    %59 = arith.cmpi eq, %7, %58 : vector<8x32xi32>
    %c7 = arith.constant 7 : index
    %60 = memref.load %arg1[%c7] : memref<11xf32, #tpu.memory_space<smem>>
    %cst_11 = arith.constant 0.000000e+00 : f32
    %61 = vector.broadcast %60 : f32 to vector<8x32xf32>
    %62 = vector.broadcast %cst_11 : f32 to vector<8x32xf32>
    %63 = arith.select %59, %61, %62 : vector<8x32xi1>, vector<8x32xf32>
    %64 = arith.addf %57, %63 : vector<8x32xf32>
    %c8_i32 = arith.constant 8 : i32
    %65 = vector.broadcast %c8_i32 : i32 to vector<8x32xi32>
    %66 = arith.cmpi eq, %7, %65 : vector<8x32xi32>
    %c8 = arith.constant 8 : index
    %67 = memref.load %arg1[%c8] : memref<11xf32, #tpu.memory_space<smem>>
    %cst_12 = arith.constant 0.000000e+00 : f32
    %68 = vector.broadcast %67 : f32 to vector<8x32xf32>
    %69 = vector.broadcast %cst_12 : f32 to vector<8x32xf32>
    %70 = arith.select %66, %68, %69 : vector<8x32xi1>, vector<8x32xf32>
    %71 = arith.addf %64, %70 : vector<8x32xf32>
    %c9_i32 = arith.constant 9 : i32
    %72 = vector.broadcast %c9_i32 : i32 to vector<8x32xi32>
    %73 = arith.cmpi eq, %7, %72 : vector<8x32xi32>
    %c9 = arith.constant 9 : index
    %74 = memref.load %arg1[%c9] : memref<11xf32, #tpu.memory_space<smem>>
    %cst_13 = arith.constant 0.000000e+00 : f32
    %75 = vector.broadcast %74 : f32 to vector<8x32xf32>
    %76 = vector.broadcast %cst_13 : f32 to vector<8x32xf32>
    %77 = arith.select %73, %75, %76 : vector<8x32xi1>, vector<8x32xf32>
    %78 = arith.addf %71, %77 : vector<8x32xf32>
    %c10_i32 = arith.constant 10 : i32
    %79 = vector.broadcast %c10_i32 : i32 to vector<8x32xi32>
    %80 = arith.cmpi eq, %7, %79 : vector<8x32xi32>
    %c10 = arith.constant 10 : index
    %81 = memref.load %arg1[%c10] : memref<11xf32, #tpu.memory_space<smem>>
    %cst_14 = arith.constant 0.000000e+00 : f32
    %82 = vector.broadcast %81 : f32 to vector<8x32xf32>
    %83 = vector.broadcast %cst_14 : f32 to vector<8x32xf32>
    %84 = arith.select %80, %82, %83 : vector<8x32xi1>, vector<8x32xf32>
    %85 = arith.addf %78, %84 : vector<8x32xf32>
    %86 = tpu.iota {dimensions = array<i32: 0>} : vector<32x19xi32>
    %87 = tpu.iota {dimensions = array<i32: 1>} : vector<32x19xi32>
    %c3_i32_15 = arith.constant 3 : i32
    %88 = vector.broadcast %c3_i32_15 : i32 to vector<32x19xi32>
    %89 = arith.addi %86, %88 : vector<32x19xi32>
    %c2_i32_16 = arith.constant 2 : i32
    %90 = vector.broadcast %c2_i32_16 : i32 to vector<32x19xi32>
    %91 = arith.muli %90, %87 : vector<32x19xi32>
    %92 = arith.cmpi eq, %89, %91 : vector<32x19xi32>
    %cst_17 = arith.constant 1.000000e+00 : f32
    %cst_18 = arith.constant 0.000000e+00 : f32
    %93 = vector.broadcast %cst_17 : f32 to vector<32x19xf32>
    %94 = vector.broadcast %cst_18 : f32 to vector<32x19xf32>
    %95 = arith.select %92, %93, %94 : vector<32x19xi1>, vector<32x19xf32>
    %cst_19 = arith.constant dense<0.000000e+00> : vector<8x32xf32>
    %96 = tpu.matmul %85, %0, %cst_19 {dimension_numbers = #tpu.dot_dimension_numbers<[1], [0], [0], [1], [0, 0, 1, 1], [], []>} : vector<8x32xf32>, vector<32x32xf32>, vector<8x32xf32> -> vector<8x32xf32>
    %cst_20 = arith.constant dense<0.000000e+00> : vector<8x19xf32>
    %97 = tpu.matmul %96, %95, %cst_20 {dimension_numbers = #tpu.dot_dimension_numbers<[1], [0], [0], [1], [0, 0, 1, 1], [], []>} : vector<8x32xf32>, vector<32x19xf32>, vector<8x19xf32> -> vector<8x19xf32>
    %c0_21 = arith.constant 0 : index
    %98 = memref.load %arg3[%c0_21] : memref<1xf32, #tpu.memory_space<smem>>
    %99 = vector.broadcast %98 : f32 to vector<8x19xf32>
    %100 = arith.addf %97, %99 : vector<8x19xf32>
    %101 = tpu.iota {dimensions = array<i32: 0>} : vector<19x128xi32>
    %102 = tpu.iota {dimensions = array<i32: 1>} : vector<19x128xi32>
    %c3_i32_22 = arith.constant 3 : i32
    %103 = vector.broadcast %c3_i32_22 : i32 to vector<19x128xi32>
    %104 = arith.muli %103, %101 : vector<19x128xi32>
    %105 = arith.subi %102, %104 : vector<19x128xi32>
    %cst_23 = arith.constant 0.000000e+00 : f32
    %106 = vector.broadcast %cst_23 : f32 to vector<19x128xf32>
    %c0_i32_24 = arith.constant 0 : i32
    %107 = vector.broadcast %c0_i32_24 : i32 to vector<19x128xi32>
    %108 = arith.cmpi eq, %105, %107 : vector<19x128xi32>
    %c0_25 = arith.constant 0 : index
    %109 = memref.load %arg2[%c0_25] : memref<3xf32, #tpu.memory_space<smem>>
    %cst_26 = arith.constant 0.000000e+00 : f32
    %110 = vector.broadcast %109 : f32 to vector<19x128xf32>
    %111 = vector.broadcast %cst_26 : f32 to vector<19x128xf32>
    %112 = arith.select %108, %110, %111 : vector<19x128xi1>, vector<19x128xf32>
    %113 = arith.addf %106, %112 : vector<19x128xf32>
    %c1_i32_27 = arith.constant 1 : i32
    %114 = vector.broadcast %c1_i32_27 : i32 to vector<19x128xi32>
    %115 = arith.cmpi eq, %105, %114 : vector<19x128xi32>
    %c1_28 = arith.constant 1 : index
    %116 = memref.load %arg2[%c1_28] : memref<3xf32, #tpu.memory_space<smem>>
    %cst_29 = arith.constant 0.000000e+00 : f32
    %117 = vector.broadcast %116 : f32 to vector<19x128xf32>
    %118 = vector.broadcast %cst_29 : f32 to vector<19x128xf32>
    %119 = arith.select %115, %117, %118 : vector<19x128xi1>, vector<19x128xf32>
    %120 = arith.addf %113, %119 : vector<19x128xf32>
    %c2_i32_30 = arith.constant 2 : i32
    %121 = vector.broadcast %c2_i32_30 : i32 to vector<19x128xi32>
    %122 = arith.cmpi eq, %105, %121 : vector<19x128xi32>
    %c2_31 = arith.constant 2 : index
    %123 = memref.load %arg2[%c2_31] : memref<3xf32, #tpu.memory_space<smem>>
    %cst_32 = arith.constant 0.000000e+00 : f32
    %124 = vector.broadcast %123 : f32 to vector<19x128xf32>
    %125 = vector.broadcast %cst_32 : f32 to vector<19x128xf32>
    %126 = arith.select %122, %124, %125 : vector<19x128xi1>, vector<19x128xf32>
    %127 = arith.addf %120, %126 : vector<19x128xf32>
    %cst_33 = arith.constant dense<0.000000e+00> : vector<8x128xf32>
    %128 = tpu.matmul %100, %127, %cst_33 {dimension_numbers = #tpu.dot_dimension_numbers<[1], [0], [0], [1], [0, 0, 1, 1], [], []>} : vector<8x19xf32>, vector<19x128xf32>, vector<8x128xf32> -> vector<8x128xf32>
    %c0_34 = arith.constant 0 : index
    %129 = memref.load %arg4[%c0_34] : memref<1xf32, #tpu.memory_space<smem>>
    %130 = vector.broadcast %129 : f32 to vector<8x128xf32>
    %131 = arith.addf %128, %130 : vector<8x128xf32>
    %132 = arith.negf %131 : vector<8x128xf32>
    %133 = math.exp %132 : vector<8x128xf32>
    %cst_35 = arith.constant 1.000000e+00 : f32
    %134 = vector.broadcast %cst_35 : f32 to vector<8x128xf32>
    %135 = arith.addf %134, %133 : vector<8x128xf32>
    %136 = arith.divf %134, %135 : vector<8x128xf32>
    %c0_36 = arith.constant 0 : index
    %c0_37 = arith.constant 0 : index
    %137 = vector.load %arg5[%c0_36, %c0_37] : memref<8x128xf32, #tpu.memory_space<vmem>>, vector<8x128xf32>
    tpu.vector_store %arg5[%c0_36, %c0_37], %136 {strides = array<i32>} : memref<8x128xf32, #tpu.memory_space<vmem>>, vector<8x128xf32>,
    return
  }
}

</mosaic_0001>

<llo_original>
// kernel: tpu_custom_call.1
$region0: #{tpu_custom_call.1}
  #allocation0 [shape = 'u32[]', space=smem, size = 0x4, offset = 0x4, fixed_abs, tag = 'smem constant byte address 0x4 - core index']
  #allocation1 [shape = 'u32[144,128]{1,0:T(1,128)}', space=vmem, size = 0x12000, scoped, tag = 'internal scratch']
  #allocation2 [shape = 'f32[1]{0:T(128)S(6)}', space=smem, size = 0x200, scoped, tag = 'scoped memory for tpu_custom_call.1']
  #allocation3 [shape = 'f32[1]{0:T(128)S(6)}', space=smem, size = 0x200, scoped, tag = 'scoped memory for tpu_custom_call.1']
  %s0 = inlined_call_operand.hbm [shape: f32[32,32], index: 0, kind: input, shape index: {}]
  %s1 = inlined_call_operand.vmem [shape: f32[11], index: 1, kind: input, shape index: {}]
  %s2 = inlined_call_operand.vmem [shape: f32[3], index: 2, kind: input, shape index: {}]
  %s3 = inlined_call_operand.<no memory space> [shape: f32[1], index: 3, kind: input, shape index: {}]
  %s4 = inlined_call_operand.<no memory space> [shape: f32[1], index: 4, kind: input, shape index: {}]
  %s5 = inlined_call_operand.hbm [shape: f32[8,128], index: 5, kind: output, shape index: {}]
  %s6 = sld [smem:[#allocation0]]
  $region42: #{tpu_custom_call.1} parent=0
    _
  %s8 = ssub.s32 1, %s6
  %s9 = scalar_select 0, %s8, %s6
  %10 = sst [smem:[#allocation2]] %s3
  %11 = sst [smem:[#allocation3]] %s4
  $region1: #{tpu_custom_call.1} parent=0
    #allocation4 [shape = 'u8[16384]{0}', space=vmem, size = 0x4000, scoped, tag = 'input window, operand 0, single buffered']
    #allocation5 [shape = 's32[1]{0}', space=sflag, size = 0x4, scoped, tag = 'scoped memory for tpu_custom_call.1']
    #allocation6 [shape = 's32[1]{0}', space=sflag, size = 0x4, scoped, tag = 'scoped memory for tpu_custom_call.1']
    #allocation7 [shape = 's32[1]{0}', space=sflag, size = 0x4, scoped, tag = 'scoped memory for tpu_custom_call.1']
    #allocation8 [shape = 'u8[512]{0}', space=smem, size = 0x200, scoped, tag = 'input window, operand 1, single buffered']
    #allocation9 [shape = 'u8[512]{0}', space=smem, size = 0x200, scoped, tag = 'input window, operand 2, single buffered']
    #allocation10 [shape = 's32[1]{0}', space=sflag, size = 0x4, scoped, tag = 'scoped memory for tpu_custom_call.1']
    #allocation11 [shape = 'u8[4096]{0}', space=vmem, size = 0x1000, scoped, tag = 'output window, operand 0, single buffered']
    %12 = vsyncpa [#allocation5], 0
    %13 = vsyncpa [#allocation7], 0
    %14 = vsyncpa [#allocation10], 0
    %15 = vsyncpa [#allocation6], 0
    // Predicated region
    $region2: #{tpu_custom_call.1} parent=1 // pred_check
      _
    $region3: #{tpu_custom_call.1} parent=1 // pred_check_branch
      %17 = sbr.rel (0) target = $region5
    $region4: #{tpu_custom_call.1} parent=1 // pred_region
      %s19 = ssub.s32 512, 512
      %20 = vsyncadd [#allocation5], %s19
      %s21 = sshll.u32 [#allocation4], 4
      %s22 = int_to_ptr.vmem [resolvable:$true] %s21
      %27 = dma.hbm_to_vmem [thread:$0]  %s0, 512, %s22, [#allocation5], 128, 128, 8
    $region5: #{tpu_custom_call.1} parent=1 // pred_fallthru
      _
    // Predicated region
    $region6: #{tpu_custom_call.1} parent=1 // pred_check
      _
    $region7: #{tpu_custom_call.1} parent=1 // pred_check_branch
      %29 = sbr.rel (0) target = $region9
    $region8: #{tpu_custom_call.1} parent=1 // pred_region
      %s31 = ssub.s32 16, 16
      %32 = vsyncadd [#allocation7], %s31
      %s34 = sshll.u32 %s1, 4
      %s35 = int_to_ptr.vmem [resolvable:$true] %s34
      %37 = dma.vmem_to_smem %s35, 16, [#allocation8], [#allocation7]
    $region9: #{tpu_custom_call.1} parent=1 // pred_fallthru
      _
    // Predicated region
    $region10: #{tpu_custom_call.1} parent=1 // pred_check
      _
    $region11: #{tpu_custom_call.1} parent=1 // pred_check_branch
      %39 = sbr.rel (0) target = $region13
    $region12: #{tpu_custom_call.1} parent=1 // pred_region
      %s41 = ssub.s32 16, 16
      %42 = vsyncadd [#allocation10], %s41
      %s44 = sshll.u32 %s2, 4
      %s45 = int_to_ptr.vmem [resolvable:$true] %s44
      %47 = dma.vmem_to_smem %s45, 16, [#allocation9], [#allocation10]
    $region13: #{tpu_custom_call.1} parent=1 // pred_fallthru
      _
    // Predicated region
    $region14: #{tpu_custom_call.1} parent=1 // pred_check
      _
    $region15: #{tpu_custom_call.1} parent=1 // pred_check_branch
      %49 = sbr.rel (0) target = $region17
    $region16: #{tpu_custom_call.1} parent=1 // pred_region
      _
    $region17: #{tpu_custom_call.1} parent=1 // pred_fallthru
      _
    // Predicated region
    $region18: #{tpu_custom_call.1} parent=1 // pred_check
      _
    $region19: #{tpu_custom_call.1} parent=1 // pred_check_branch
      %51 = sbr.rel (0) target = $region21
    $region20: #{tpu_custom_call.1} parent=1 // pred_region
      _
    $region21: #{tpu_custom_call.1} parent=1 // pred_fallthru
      _
    // Predicated region
    $region22: #{tpu_custom_call.1} parent=1 // pred_check
      _
    $region23: #{tpu_custom_call.1} parent=1 // pred_check_branch
      %53 = sbr.rel (0) target = $region25
    $region24: #{tpu_custom_call.1} parent=1 // pred_region
      %54 = dma.done [#allocation5], 512
    $region25: #{tpu_custom_call.1} parent=1 // pred_fallthru
      _
    // Predicated region
    $region26: #{tpu_custom_call.1} parent=1 // pred_check
      _
    $region27: #{tpu_custom_call.1} parent=1 // pred_check_branch
      %56 = sbr.rel (0) target = $region29
    $region28: #{tpu_custom_call.1} parent=1 // pred_region
      %57 = dma.done [#allocation7], 16
    $region29: #{tpu_custom_call.1} parent=1 // pred_fallthru
      _
    // Predicated region
    $region30: #{tpu_custom_call.1} parent=1 // pred_check
      _
    $region31: #{tpu_custom_call.1} parent=1 // pred_check_branch
      %59 = sbr.rel (0) target = $region33
    $region32: #{tpu_custom_call.1} parent=1 // pred_region
      %60 = dma.done [#allocation10], 16
    $region33: #{tpu_custom_call.1} parent=1 // pred_fallthru
      _
    %61 = sfence
    %v62 = vld [vmem:[#allocation4] sm:$0xff]
    %v63 = vld [vmem:[#allocation4 + $0x8] sm:$0xff]
    %v64 = vld [vmem:[#allocation4 + $0x10] sm:$0xff]
    %v65 = vld [vmem:[#allocation4 + $0x18] sm:$0xff]
    %v66 = vlaneseq
    %v67 = vshrl.u32 %v66, 7
    %v68 = vlaneseq
    %v69 = vand.u32 %v68, 127
    %v70 = vadd.s32 %v69, 1
    %v71 = vmul.u32 %v67, 3
    %v72 = vsub.s32 %v70, %v71
    %vm73 = vcmp.eq.s32.totalorder %v72, 0
    %s74 = sld [smem:[#allocation8]]
    %v75 = vstv %s74
    %v76 = vsel %vm73, %v75, 0.0
    %v77 = vadd.f32 %v76, 0.0
    %vm78 = vcmp.eq.s32.totalorder %v72, 1
    %s79 = sld [smem:[#allocation8 + $0x1]]
    %v80 = vstv %s79
    %v81 = vsel %vm78, %v80, 0.0
    %v82 = vadd.f32 %v77, %v81
    %vm83 = vcmp.eq.s32.totalorder %v72, 2
    %s84 = sld [smem:[#allocation8 + $0x2]]
    %v85 = vstv %s84
    %v86 = vsel %vm83, %v85, 0.0
    %v87 = vadd.f32 %v82, %v86
    %vm88 = vcmp.eq.s32.totalorder %v72, 3
    %s89 = sld [smem:[#allocation8 + $0x3]]
    %v90 = vstv %s89
    %v91 = vsel %vm88, %v90, 0.0
    %v92 = vadd.f32 %v87, %v91
    %vm93 = vcmp.eq.s32.totalorder %v72, 4
    %s94 = sld [smem:[#allocation8 + $0x4]]
    %v95 = vstv %s94
    %v96 = vsel %vm93, %v95, 0.0
    %v97 = vadd.f32 %v92, %v96
    %vm98 = vcmp.eq.s32.totalorder %v72, 5
    %s99 = sld [smem:[#allocation8 + $0x5]]
    %v100 = vstv %s99
    %v101 = vsel %vm98, %v100, 0.0
    %v102 = vadd.f32 %v97, %v101
    %vm103 = vcmp.eq.s32.totalorder %v72, 6
    %s104 = sld [smem:[#allocation8 + $0x6]]
    %v105 = vstv %s104
    %v106 = vsel %vm103, %v105, 0.0
    %v107 = vadd.f32 %v102, %v106
    %vm108 = vcmp.eq.s32.totalorder %v72, 7
    %s109 = sld [smem:[#allocation8 + $0x7]]
    %v110 = vstv %s109
    %v111 = vsel %vm108, %v110, 0.0
    %v112 = vadd.f32 %v107, %v111
    %vm113 = vcmp.eq.s32.totalorder %v72, 8
    %s114 = sld [smem:[#allocation8 + $0x8]]
    %v115 = vstv %s114
    %v116 = vsel %vm113, %v115, 0.0
    %v117 = vadd.f32 %v112, %v116
    %vm118 = vcmp.eq.s32.totalorder %v72, 9
    %s119 = sld [smem:[#allocation8 + $0x9]]
    %v120 = vstv %s119
    %v121 = vsel %vm118, %v120, 0.0
    %v122 = vadd.f32 %v117, %v121
    %vm123 = vcmp.eq.s32.totalorder %v72, 10
    %s124 = sld [smem:[#allocation8 + $0xa]]
    %v125 = vstv %s124
    %v126 = vsel %vm123, %v125, 0.0
    %v127 = vadd.f32 %v122, %v126
    %v128 = vadd.s32 %v67, 8
    %v129 = vadd.s32 %v67, 16
    %v130 = vadd.s32 %v67, 24
    %v131 = vadd.s32 %v67, 3
    %v132 = vadd.s32 %v128, 3
    %v133 = vadd.s32 %v129, 3
    %v134 = vadd.s32 %v130, 3
    %v135 = vmul.u32 %v69, 2
    %vm136 = vcmp.eq.s32.totalorder %v131, %v135
    %vm137 = vcmp.eq.s32.totalorder %v132, %v135
    %vm138 = vcmp.eq.s32.totalorder %v133, %v135
    %vm139 = vcmp.eq.s32.totalorder %v134, %v135
    %v140 = vsel %vm136, 1.0, 0.0
    %v141 = vsel %vm137, 1.0, 0.0
    %v142 = vsel %vm138, 1.0, 0.0
    %v143 = vsel %vm139, 1.0, 0.0
    %vm144 = vcmask 261120
    %v146 = vsel %vm144, %v127, 0
    %148 = vmatprep.subr.mxu0 0.0
    %149 = vmatpush1.msra.mxu0 0.0
    %150 = vmatprep.subr.mxu0 0.0
    %151 = vmatpush1.msra.mxu0 0.0
    %152 = vmatprep.subr.mxu0 0.0
    %153 = vmatpush1.msra.mxu0 0.0
    %154 = vmatprep.subr.mxu0 0.0
    %155 = vmatpush1.msra.mxu0 0.0
    %156 = vmatprep.subr.mxu0 0.0
    %157 = vmatpush1.msra.mxu0 0.0
    %158 = vmatprep.subr.mxu0 0.0
    %159 = vmatpush1.msra.mxu0 0.0
    %160 = vmatprep.subr.mxu0 0.0
    %161 = vmatpush1.msra.mxu0 0.0
    %162 = vmatprep.subr.mxu0 0.0
    %163 = vmatpush1.msra.mxu0 0.0
    %164 = vmatprep.subr.mxu0 0.0
    %165 = vmatpush1.msra.mxu0 0.0
    %166 = vmatprep.subr.mxu0 0.0
    %167 = vmatpush1.msra.mxu0 0.0
    %168 = vmatprep.subr.mxu0 0.0
    %169 = vmatpush1.msra.mxu0 0.0
    %170 = vmatprep.subr.mxu0 0.0
    %171 = vmatpush1.msra.mxu0 0.0
    %172 = vmatprep.subr.mxu0 0.0
    %173 = vmatpush1.msra.mxu0 %v65
    %174 = vmatprep.subr.mxu0 0.0
    %175 = vmatpush1.msra.mxu0 %v64
    %176 = vmatprep.subr.mxu0 0.0
    %177 = vmatpush1.msra.mxu0 %v63
    %178 = vmatprep.subr.mxu0 0.0
    %179 = vmatpush1.msra.mxu0 %v62
    %180 = vmatprep.subr.mxu0 0.0
    %181 = vmatpush2.msra.mxu0 0.0
    %182 = vmatprep.subr.mxu0 0.0
    %183 = vmatpush2.msra.mxu0 0.0
    %184 = vmatprep.subr.mxu0 0.0
    %185 = vmatpush2.msra.mxu0 0.0
    %186 = vmatprep.subr.mxu0 0.0
    %187 = vmatpush2.msra.mxu0 0.0
    %188 = vmatprep.subr.mxu0 0.0
    %189 = vmatpush2.msra.mxu0 0.0
    %190 = vmatprep.subr.mxu0 0.0
    %191 = vmatpush2.msra.mxu0 0.0
    %192 = vmatprep.subr.mxu0 0.0
    %193 = vmatpush2.msra.mxu0 0.0
    %194 = vmatprep.subr.mxu0 0.0
    %195 = vmatpush2.msra.mxu0 0.0
    %196 = vmatprep.subr.mxu0 0.0
    %197 = vmatpush2.msra.mxu0 0.0
    %198 = vmatprep.subr.mxu0 0.0
    %199 = vmatpush2.msra.mxu0 0.0
    %200 = vmatprep.subr.mxu0 0.0
    %201 = vmatpush2.msra.mxu0 0.0
    %202 = vmatprep.subr.mxu0 0.0
    %203 = vmatpush2.msra.mxu0 0.0
    %204 = vmatprep.subr.mxu0 0.0
    %205 = vmatpush2.msra.mxu0 0.0
    %206 = vmatprep.subr.mxu0 0.0
    %207 = vmatpush2.msra.mxu0 0.0
    %208 = vmatprep.subr.mxu0 0.0
    %209 = vmatpush2.msra.mxu0 0.0
    %210 = vmatprep.subr.mxu0 0.0
    %211 = vmatpush2.msra.mxu0 0.0
    %212 = vmatprep.mubr.f32.mxu0 0.0
    %213 = vmatmul.mubr.f32.gmra.mxu0 %v146
    %v214 = vpop.f32.mrf.mxu0
    %v215 = vadd.f32 0.0, %v214
    %v216 = vpop.f32.mrf.mxu0
    %217 = vdwg.mxu0
    %s218 = sld [smem:[#allocation2]]
    %v219 = vstv %s218
    %v221 = vsel %vm144, %v215, 0
    %223 = vmatprep.subr.mxu0 0.0
    %224 = vmatpush1.msra.mxu0 0.0
    %225 = vmatprep.subr.mxu0 0.0
    %226 = vmatpush1.msra.mxu0 0.0
    %227 = vmatprep.subr.mxu0 0.0
    %228 = vmatpush1.msra.mxu0 0.0
    %229 = vmatprep.subr.mxu0 0.0
    %230 = vmatpush1.msra.mxu0 0.0
    %231 = vmatprep.subr.mxu0 0.0
    %232 = vmatpush1.msra.mxu0 0.0
    %233 = vmatprep.subr.mxu0 0.0
    %234 = vmatpush1.msra.mxu0 0.0
    %235 = vmatprep.subr.mxu0 0.0
    %236 = vmatpush1.msra.mxu0 0.0
    %237 = vmatprep.subr.mxu0 0.0
    %238 = vmatpush1.msra.mxu0 0.0
    %239 = vmatprep.subr.mxu0 0.0
    %240 = vmatpush1.msra.mxu0 0.0
    %241 = vmatprep.subr.mxu0 0.0
    %242 = vmatpush1.msra.mxu0 0.0
    %243 = vmatprep.subr.mxu0 0.0
    %244 = vmatpush1.msra.mxu0 0.0
    %245 = vmatprep.subr.mxu0 0.0
    %246 = vmatpush1.msra.mxu0 0.0
    %247 = vmatprep.subr.mxu0 0.0
    %248 = vmatpush1.msra.mxu0 %v143
    %249 = vmatprep.subr.mxu0 0.0
    %250 = vmatpush1.msra.mxu0 %v142
    %251 = vmatprep.subr.mxu0 0.0
    %252 = vmatpush1.msra.mxu0 %v141
    %253 = vmatprep.subr.mxu0 0.0
    %254 = vmatpush1.msra.mxu0 %v140
    %255 = vmatprep.subr.mxu0 0.0
    %256 = vmatpush2.msra.mxu0 0.0
    %257 = vmatprep.subr.mxu0 0.0
    %258 = vmatpush2.msra.mxu0 0.0
    %259 = vmatprep.subr.mxu0 0.0
    %260 = vmatpush2.msra.mxu0 0.0
    %261 = vmatprep.subr.mxu0 0.0
    %262 = vmatpush2.msra.mxu0 0.0
    %263 = vmatprep.subr.mxu0 0.0
    %264 = vmatpush2.msra.mxu0 0.0
    %265 = vmatprep.subr.mxu0 0.0
    %266 = vmatpush2.msra.mxu0 0.0
    %267 = vmatprep.subr.mxu0 0.0
    %268 = vmatpush2.msra.mxu0 0.0
    %269 = vmatprep.subr.mxu0 0.0
    %270 = vmatpush2.msra.mxu0 0.0
    %271 = vmatprep.subr.mxu0 0.0
    %272 = vmatpush2.msra.mxu0 0.0
    %273 = vmatprep.subr.mxu0 0.0
    %274 = vmatpush2.msra.mxu0 0.0
    %275 = vmatprep.subr.mxu0 0.0
    %276 = vmatpush2.msra.mxu0 0.0
    %277 = vmatprep.subr.mxu0 0.0
    %278 = vmatpush2.msra.mxu0 0.0
    %279 = vmatprep.subr.mxu0 0.0
    %280 = vmatpush2.msra.mxu0 0.0
    %281 = vmatprep.subr.mxu0 0.0
    %282 = vmatpush2.msra.mxu0 0.0
    %283 = vmatprep.subr.mxu0 0.0
    %284 = vmatpush2.msra.mxu0 0.0
    %285 = vmatprep.subr.mxu0 0.0
    %286 = vmatpush2.msra.mxu0 0.0
    %287 = vmatprep.mubr.f32.mxu0 0.0
    %288 = vmatmul.mubr.f32.gmra.mxu0 %v221
    %v289 = vpop.f32.mrf.mxu0
    %v290 = vadd.f32 %v219, %v289
    %v291 = vpop.f32.mrf.mxu0
    %292 = vdwg.mxu0
    %v293 = vmul.u32 %v128, 3
    %v294 = vmul.u32 %v129, 3
    %v295 = vsub.s32 %v69, %v71
    %v296 = vsub.s32 %v69, %v293
    %v297 = vsub.s32 %v69, %v294
    %vm298 = vcmp.eq.s32.totalorder %v295, 0
    %vm299 = vcmp.eq.s32.totalorder %v296, 0
    %vm300 = vcmp.eq.s32.totalorder %v297, 0
    %s301 = sld [smem:[#allocation9]]
    %v302 = vstv %s301
    %v303 = vsel %vm298, %v302, 0.0
    %v304 = vsel %vm299, %v302, 0.0
    %v305 = vsel %vm300, %v302, 0.0
    %v306 = vadd.f32 %v303, 0.0
    %v307 = vadd.f32 %v304, 0.0
    %v308 = vadd.f32 %v305, 0.0
    %vm309 = vcmp.eq.s32.totalorder %v295, 1
    %vm310 = vcmp.eq.s32.totalorder %v296, 1
    %vm311 = vcmp.eq.s32.totalorder %v297, 1
    %s312 = sld [smem:[#allocation9 + $0x1]]
    %v313 = vstv %s312
    %v314 = vsel %vm309, %v313, 0.0
    %v315 = vsel %vm310, %v313, 0.0
    %v316 = vsel %vm311, %v313, 0.0
    %v317 = vadd.f32 %v306, %v314
    %v318 = vadd.f32 %v307, %v315
    %v319 = vadd.f32 %v308, %v316
    %vm320 = vcmp.eq.s32.totalorder %v295, 2
    %vm321 = vcmp.eq.s32.totalorder %v296, 2
    %vm322 = vcmp.eq.s32.totalorder %v297, 2
    %s323 = sld [smem:[#allocation9 + $0x2]]
    %v324 = vstv %s323
    %v325 = vsel %vm320, %v324, 0.0
    %v326 = vsel %vm321, %v324, 0.0
    %v327 = vsel %vm322, %v324, 0.0
    %v328 = vadd.f32 %v317, %v325
    %v329 = vadd.f32 %v318, %v326
    %v330 = vadd.f32 %v319, %v327
    %s331 = sld [smem:[#allocation3]]
    %v332 = vstv %s331
    %vm333 = vcmask 154624
    %v335 = vsel %vm333, %v290, 0
    %vm337 = vcmask 1042432
    %v339 = vsel %vm337, %v330, 0
    %341 = vmatprep.subr.mxu0 0.0
    %342 = vmatpush1.msra.mxu0 0.0
    %343 = vmatprep.subr.mxu0 0.0
    %344 = vmatpush1.msra.mxu0 0.0
    %345 = vmatprep.subr.mxu0 0.0
    %346 = vmatpush1.msra.mxu0 0.0
    %347 = vmatprep.subr.mxu0 0.0
    %348 = vmatpush1.msra.mxu0 0.0
    %349 = vmatprep.subr.mxu0 0.0
    %350 = vmatpush1.msra.mxu0 0.0
    %351 = vmatprep.subr.mxu0 0.0
    %352 = vmatpush1.msra.mxu0 0.0
    %353 = vmatprep.subr.mxu0 0.0
    %354 = vmatpush1.msra.mxu0 0.0
    %355 = vmatprep.subr.mxu0 0.0
    %356 = vmatpush1.msra.mxu0 0.0
    %357 = vmatprep.subr.mxu0 0.0
    %358 = vmatpush1.msra.mxu0 0.0
    %359 = vmatprep.subr.mxu0 0.0
    %360 = vmatpush1.msra.mxu0 0.0
    %361 = vmatprep.subr.mxu0 0.0
    %362 = vmatpush1.msra.mxu0 0.0
    %363 = vmatprep.subr.mxu0 0.0
    %364 = vmatpush1.msra.mxu0 0.0
    %365 = vmatprep.subr.mxu0 0.0
    %366 = vmatpush1.msra.mxu0 0.0
    %367 = vmatprep.subr.mxu0 0.0
    %368 = vmatpush1.msra.mxu0 %v339
    %369 = vmatprep.subr.mxu0 0.0
    %370 = vmatpush1.msra.mxu0 %v329
    %371 = vmatprep.subr.mxu0 0.0
    %372 = vmatpush1.msra.mxu0 %v328
    %373 = vmatprep.subr.mxu0 0.0
    %374 = vmatpush2.msra.mxu0 0.0
    %375 = vmatprep.subr.mxu0 0.0
    %376 = vmatpush2.msra.mxu0 0.0
    %377 = vmatprep.subr.mxu0 0.0
    %378 = vmatpush2.msra.mxu0 0.0
    %379 = vmatprep.subr.mxu0 0.0
    %380 = vmatpush2.msra.mxu0 0.0
    %381 = vmatprep.subr.mxu0 0.0
    %382 = vmatpush2.msra.mxu0 0.0
    %383 = vmatprep.subr.mxu0 0.0
    %384 = vmatpush2.msra.mxu0 0.0
    %385 = vmatprep.subr.mxu0 0.0
    %386 = vmatpush2.msra.mxu0 0.0
    %387 = vmatprep.subr.mxu0 0.0
    %388 = vmatpush2.msra.mxu0 0.0
    %389 = vmatprep.subr.mxu0 0.0
    %390 = vmatpush2.msra.mxu0 0.0
    %391 = vmatprep.subr.mxu0 0.0
    %392 = vmatpush2.msra.mxu0 0.0
    %393 = vmatprep.subr.mxu0 0.0
    %394 = vmatpush2.msra.mxu0 0.0
    %395 = vmatprep.subr.mxu0 0.0
    %396 = vmatpush2.msra.mxu0 0.0
    %397 = vmatprep.subr.mxu0 0.0
    %398 = vmatpush2.msra.mxu0 0.0
    %399 = vmatprep.subr.mxu0 0.0
    %400 = vmatpush2.msra.mxu0 0.0
    %401 = vmatprep.subr.mxu0 0.0
    %402 = vmatpush2.msra.mxu0 0.0
    %403 = vmatprep.subr.mxu0 0.0
    %404 = vmatpush2.msra.mxu0 0.0
    %405 = vmatprep.mubr.f32.mxu0 0.0
    %406 = vmatmul.mubr.f32.gmra.mxu0 %v335
    %v407 = vpop.f32.mrf.mxu0
    %v408 = vadd.f32 %v332, %v407
    %v409 = vpop.f32.mrf.mxu0
    %410 = vdwg.mxu0
    %v411 = vxor.u32 %v408, 2147483648
    %v412 = vmul.f32 %v411, 1.442695
    %v413 = vpow.pop %v412
    %v414 = vadd.f32 %v413, 1.0
    %v415 = vrcp.pop %v414
    %v416 = vmul.f32 1.0, %v415
    %417 = vst [vmem:[#allocation11] sm:$0xff] %v416
    // Predicated region
    $region34: #{tpu_custom_call.1} parent=1 // pred_check
      _
    $region35: #{tpu_custom_call.1} parent=1 // pred_check_branch
      %419 = sbr.rel (0) target = $region37
    $region36: #{tpu_custom_call.1} parent=1 // pred_region
      %s421 = ssub.s32 128, 128
      %422 = vsyncadd [#allocation6], %s421
      %s424 = sshll.u32 [#allocation11], 4
      %s425 = int_to_ptr.vmem [resolvable:$true] %s424
      %427 = dma.vmem_to_hbm [thread:$0]  %s425, 128, %s5, [#allocation6]
    $region37: #{tpu_custom_call.1} parent=1 // pred_fallthru
      _
    // Predicated region
    $region38: #{tpu_custom_call.1} parent=1 // pred_check
      _
    $region39: #{tpu_custom_call.1} parent=1 // pred_check_branch
      %429 = sbr.rel (0) target = $region41
    $region40: #{tpu_custom_call.1} parent=1 // pred_region
      %430 = dma.done [#allocation6], 128
    $region41: #{tpu_custom_call.1} parent=1 // pred_fallthru
      _
    %431 = vsyncpa [#allocation5], 1
    %432 = vsyncpa [#allocation6], 1
    %433 = vsyncpa [#allocation7], 1
    %434 = vsyncpa [#allocation10], 1

</llo_original>
